<compile_context>
chip_gen: v7x
topology: tpu7x:2x2x1
jax: 0.10.0
libtpu: 0.0.40
codegen_flags: <defaults>
</compile_context>

<pallas_src>
import functools

import jax
import jax.numpy as jnp
from jax.experimental import pallas as pl
from jax.experimental.pallas import tpu as pltpu


def _diff_attn_kernel(x1_ref, x2_ref, w1d_ref, w1x_ref, b1_ref, w2_ref, b2_ref,
                      df_ref, am_ref=None, *, conv2_on_mxu=False):
    # Tiles are (C, tn): channels on sublanes, pixels on lanes.
    x1 = x1_ref[...]
    x2 = x2_ref[...]
    diff = jnp.abs(x1 - x2)

    # conv1 (1x1) on the channel-concat [diff, x1]:
    #   h = W1[:, :C] @ diff + W1[:, C:] @ x1 + b1        -> (Cmid, tn), MXU.
    # (Default matmul precision passes the 1e-4 check; pass
    #  precision=jax.lax.Precision.HIGHEST here if bit-level f32 parity is needed.)
    h = (jnp.dot(w1d_ref[...], diff, preferred_element_type=jnp.float32)
         + jnp.dot(w1x_ref[...], x1, preferred_element_type=jnp.float32)
         + b1_ref[...])
    h = jnp.maximum(h, 0.0)

    if conv2_on_mxu:
        # K=Cmid matmul: the MXU is nearly idle here, so this frees VPU/XLU
        # slots (useful on v7x when memory time per tile is shortest).
        logits = (jnp.dot(w2_ref[...], h, preferred_element_type=jnp.float32)
                  + b2_ref[...])
    else:
        # conv2 (1x1): Cmid is tiny (e.g. 2) -> broadcast FMAs on the VPU
        # instead of a wasteful K=2 MXU matmul.  Static trace-time loop.
        w2 = w2_ref[...]                       # (C, Cmid)
        cmid = w2.shape[1]
        logits = w2[:, 0:1] * h[0:1, :]
        for k in range(1, cmid):
            logits = logits + w2[:, k:k + 1] * h[k:k + 1, :]
        logits = logits + b2_ref[...]          # (C, tn)

    # sigmoid(x) == 0.5 * (1 + tanh(x/2)): a single EUP op per element instead
    # of exp + divide -> halves EUP traffic, keeps the VALU slot free.
    att = 0.5 * (jnp.tanh(0.5 * logits) + 1.0)

    if am_ref is not None:
        am_ref[...] = att.astype(am_ref.dtype)

    # Recompute |x1 - x2| from the still-resident input buffers right before
    # the store rather than keeping the (C, tn) diff temporary live across the
    # matmuls + tanh (avoids a spill/reload; biggest help on v5e's 1 vst slot).
    diff_out = jnp.abs(x1_ref[...] - x2_ref[...])
    df_ref[...] = (diff_out * att).astype(df_ref.dtype)


def _vmem_cap_bytes():
    """Per-generation scoped-VMEM cap, leaving compiler headroom below physical."""
    phys = 64 * 1024 * 1024                     # conservative default
    try:
        info = pltpu.get_tpu_info()
        phys = int(getattr(info, "vmem_capacity_bytes", phys))
    except Exception:
        pass
    if phys <= 64 * 1024 * 1024:                # v7x-class: 64 MiB per TC
        return 48 * 1024 * 1024
    return 100 * 1024 * 1024                    # v5e / v6e: 128 MiB


def difference_attention_pallas(x1, x2, w1, b1, w2, b2, *,
                                tile_pixels=None,
                                return_attention_map=True,
                                out_dtype=None,
                                conv2_on_mxu=False):
    """x1, x2: (B, C, H, W) float32.  w1: (Cmid, 2C), b1: (Cmid,),
    w2: (C, Cmid), b2: (C,).

    Returns (diff_features, attention_map) in NCHW (or just diff_features if
    return_attention_map=False).  tile_pixels=None -> auto (largest tile that
    fits the per-generation VMEM budget, up to the full H*W)."""
    B, C, H, W = x1.shape
    Cmid = w1.shape[0]
    HW = H * W
    out_dtype = x1.dtype if out_dtype is None else out_dtype

    # NCHW -> (B, C, H*W): free reshape, no transpose.
    x1m = x1.reshape(B, C, HW)
    x2m = x2.reshape(B, C, HW)

    # Split conv1 weight along its input-channel axis: first C columns act on
    # diff, last C columns act on x1.  Used directly as left-matmul weights.
    w1_d = w1[:, :C]                  # (Cmid, C)
    w1_x = w1[:, C:]                  # (Cmid, C)
    b1_col = b1.reshape(Cmid, 1)
    b2_col = b2.reshape(C, 1)

    # --- generation-aware tile sizing -------------------------------------
    vmem_cap = _vmem_cap_bytes()
    # Budget model: (2 in + <=2 out) streams x 2 pipeline buffers, plus the
    # in-kernel (C, tn) f32 temporaries -> ~16 tile-equivalents, plus a 4 MiB
    # margin for weights / Mosaic internal scratch.
    bytes_per_px = C * 4
    max_tn = (vmem_cap - (4 << 20)) // (16 * bytes_per_px)
    max_tn = max(128, (max_tn // 128) * 128)

    tn = HW if tile_pixels is None else min(int(tile_pixels), HW)
    tn = min(tn, max_tn)
    if tn < HW:
        # Sub-extent tiles must be lane-aligned (multiple of 128).
        tn = max(128, (tn // 128) * 128)
    # NOTE: if HW < 128 the lane axis is underfilled and output stores are
    # masked (vst.msk); pad H*W to a multiple of 128 upstream if such small
    # feature maps matter for production performance.

    grid = (B, pl.cdiv(HW, tn))

    row_spec = pl.BlockSpec((None, C, tn), lambda b, p: (b, 0, p))
    full = lambda shape: pl.BlockSpec(shape, lambda b, p: (0, 0))

    tile_bytes = C * tn * 4
    vmem_limit = int(min(vmem_cap, max(32 << 20, 16 * tile_bytes + (4 << 20))))

    if return_attention_map:
        out_shape = (jax.ShapeDtypeStruct((B, C, HW), out_dtype),
                     jax.ShapeDtypeStruct((B, C, HW), out_dtype))
        out_specs = [row_spec, row_spec]
    else:
        out_shape = jax.ShapeDtypeStruct((B, C, HW), out_dtype)
        out_specs = row_spec

    kernel = functools.partial(_diff_attn_kernel, conv2_on_mxu=conv2_on_mxu)

    result = pl.pallas_call(
        kernel,
        out_shape=out_shape,
        grid_spec=pltpu.PrefetchScalarGridSpec(
            num_scalar_prefetch=0,
            grid=grid,
            in_specs=[row_spec,                 # x1 tile   (C, tn)
                      row_spec,                 # x2 tile   (C, tn)
                      full((Cmid, C)),          # W1 (diff half)
                      full((Cmid, C)),          # W1 (x1 half)
                      full((Cmid, 1)),          # b1
                      full((C, Cmid)),          # W2
                      full((C, 1))],            # b2
            out_specs=out_specs,
        ),
        compiler_params=pltpu.CompilerParams(
            dimension_semantics=("parallel", "parallel"),
            vmem_limit_bytes=vmem_limit),
    )(x1m, x2m, w1_d, w1_x, b1_col, w2, b2_col)

    if return_attention_map:
        df_m, am_m = result
        return df_m.reshape(B, C, H, W), am_m.reshape(B, C, H, W)
    return result.reshape(B, C, H, W)


def _reference(x1, x2, w1, b1, w2, b2):
    """Pure-JAX reference mirroring the PyTorch forward (NCHW, 1x1 convs)."""
    diff = jnp.abs(x1 - x2)
    combined = jnp.concatenate([diff, x1], axis=1)           # (B, 2C, H, W)
    h = jnp.einsum('bchw,oc->bohw', combined, w1) + b1[None, :, None, None]
    h = jnp.maximum(h, 0.0)
    logits = jnp.einsum('bchw,oc->bohw', h, w2) + b2[None, :, None, None]
    att = jax.nn.sigmoid(logits)
    return diff * att, att


def _make_params(key, C, reduction):
    Cmid = C // reduction
    kw1, kb1, kw2, kb2 = jax.random.split(key, 4)
    fan_in1 = 2 * C
    fan_in2 = Cmid
    w1 = jax.random.uniform(kw1, (Cmid, 2 * C), jnp.float32,
                            -1.0 / fan_in1 ** 0.5, 1.0 / fan_in1 ** 0.5)
    b1 = jax.random.uniform(kb1, (Cmid,), jnp.float32,
                            -1.0 / fan_in1 ** 0.5, 1.0 / fan_in1 ** 0.5)
    w2 = jax.random.uniform(kw2, (C, Cmid), jnp.float32,
                            -1.0 / fan_in2 ** 0.5, 1.0 / fan_in2 ** 0.5)
    b2 = jax.random.uniform(kb2, (C,), jnp.float32,
                            -1.0 / fan_in2 ** 0.5, 1.0 / fan_in2 ** 0.5)
    return w1, b1, w2, b2


if __name__ == "__main__":
    # Module config: in_channels=32, reduction=16 -> hidden channels Cmid = 2.
    C, reduction = 32, 16
    key = jax.random.PRNGKey(0)
    kp, k1, k2, k3, k4 = jax.random.split(key, 5)
    w1, b1, w2, b2 = _make_params(kp, C, reduction)

    # Tolerance: sigmoid is computed as 0.5*(1+tanh(x/2)) on the EUP, which can
    # differ from jax.nn.sigmoid at the ~1e-6 level; 1e-4 gives margin.
    TOL = 1e-4

    # Case 1: small demo shape (HW=64 < 128; single full-extent tile per batch).
    B, H, W = 2, 8, 8
    x1 = jax.random.normal(k1, (B, C, H, W), dtype=jnp.float32)
    x2 = jax.random.normal(k2, (B, C, H, W), dtype=jnp.float32)
    df, am = difference_attention_pallas(x1, x2, w1, b1, w2, b2)
    jax.block_until_ready((df, am))
    ref_df, ref_am = _reference(x1, x2, w1, b1, w2, b2)
    assert df.shape == (B, C, H, W) and am.shape == (B, C, H, W)
    assert jnp.allclose(df, ref_df, atol=TOL, rtol=TOL)
    assert jnp.allclose(am, ref_am, atol=TOL, rtol=TOL)

    # Case 1b: single-output variant (drops one of four HBM streams).
    df_only = difference_attention_pallas(x1, x2, w1, b1, w2, b2,
                                          return_attention_map=False)
    jax.block_until_ready(df_only)
    assert jnp.allclose(df_only, ref_df, atol=TOL, rtol=TOL)

    # Case 2: multi-block (parallel x parallel) grid with lane-aligned
    # 128-pixel tiles.
    B2, H2, W2 = 1, 16, 16
    y1 = jax.random.normal(k3, (B2, C, H2, W2), dtype=jnp.float32)
    y2 = jax.random.normal(k4, (B2, C, H2, W2), dtype=jnp.float32)
    df2, am2 = difference_attention_pallas(y1, y2, w1, b1, w2, b2,
                                           tile_pixels=128)
    jax.block_until_ready((df2, am2))
    ref_df2, ref_am2 = _reference(y1, y2, w1, b1, w2, b2)
    assert jnp.allclose(df2, ref_df2, atol=TOL, rtol=TOL)
    assert jnp.allclose(am2, ref_am2, atol=TOL, rtol=TOL)

    print("KERNEL_OK")
</pallas_src>

<mosaic_0001>
module attributes {stable_mosaic.version = 11 : i64} {
  func.func @_diff_attn_kernel(%arg0: i32, %arg1: i32, %arg2: memref<1x32x64xf32, #tpu.memory_space<vmem>>, %arg3: memref<1x32x64xf32, #tpu.memory_space<vmem>>, %arg4: memref<2x32xf32, #tpu.memory_space<vmem>>, %arg5: memref<2x32xf32, #tpu.memory_space<vmem>>, %arg6: memref<2x1xf32, #tpu.memory_space<vmem>>, %arg7: memref<32x2xf32, #tpu.memory_space<vmem>>, %arg8: memref<32x1xf32, #tpu.memory_space<vmem>>, %arg9: memref<1x32x64xf32, #tpu.memory_space<vmem>>, %arg10: memref<1x32x64xf32, #tpu.memory_space<vmem>>) attributes {dimension_semantics = [#tpu.dimension_semantics<parallel>, #tpu.dimension_semantics<parallel>], iteration_bounds = array<i64: 2, 1>, scalar_prefetch = 0 : i64, scratch_operands = 0 : i64, tpu.core_type = #tpu.core_type<tc>, window_params = [{transform_indices = @transform_0, window_bounds = array<i64: 1, 32, 64>}, {transform_indices = @transform_1, window_bounds = array<i64: 1, 32, 64>}, {pipeline_mode = #tpu.pipeline_mode<synchronous>, transform_indices = @transform_2, window_bounds = array<i64: 2, 32>}, {pipeline_mode = #tpu.pipeline_mode<synchronous>, transform_indices = @transform_3, window_bounds = array<i64: 2, 32>}, {pipeline_mode = #tpu.pipeline_mode<synchronous>, transform_indices = @transform_4, window_bounds = array<i64: 2, 1>}, {pipeline_mode = #tpu.pipeline_mode<synchronous>, transform_indices = @transform_5, window_bounds = array<i64: 32, 2>}, {pipeline_mode = #tpu.pipeline_mode<synchronous>, transform_indices = @transform_6, window_bounds = array<i64: 32, 1>}, {transform_indices = @transform_7, window_bounds = array<i64: 1, 32, 64>}, {transform_indices = @transform_8, window_bounds = array<i64: 1, 32, 64>}]} {
    %c0 = arith.constant 0 : index
    %c0_0 = arith.constant 0 : index
    %c0_1 = arith.constant 0 : index
    %0 = vector.load %arg2[%c0, %c0_0, %c0_1] : memref<1x32x64xf32, #tpu.memory_space<vmem>>, vector<1x32x64xf32>
    %1 = vector.shape_cast %0 : vector<1x32x64xf32> to vector<32x64xf32>
    %c0_2 = arith.constant 0 : index
    %c0_3 = arith.constant 0 : index
    %c0_4 = arith.constant 0 : index
    %2 = vector.load %arg3[%c0_2, %c0_3, %c0_4] : memref<1x32x64xf32, #tpu.memory_space<vmem>>, vector<1x32x64xf32>
    %3 = vector.shape_cast %2 : vector<1x32x64xf32> to vector<32x64xf32>
    %4 = arith.subf %1, %3 : vector<32x64xf32>
    %5 = math.absf %4 : vector<32x64xf32>
    %c0_5 = arith.constant 0 : index
    %c0_6 = arith.constant 0 : index
    %6 = vector.load %arg4[%c0_5, %c0_6] : memref<2x32xf32, #tpu.memory_space<vmem>>, vector<2x32xf32>
    %cst = arith.constant dense<0.000000e+00> : vector<2x64xf32>
    %7 = tpu.matmul %6, %5, %cst {dimension_numbers = #tpu.dot_dimension_numbers<[1], [0], [0], [1], [0, 0, 1, 1], [], []>} : vector<2x32xf32>, vector<32x64xf32>, vector<2x64xf32> -> vector<2x64xf32>
    %c0_7 = arith.constant 0 : index
    %c0_8 = arith.constant 0 : index
    %8 = vector.load %arg5[%c0_7, %c0_8] : memref<2x32xf32, #tpu.memory_space<vmem>>, vector<2x32xf32>
    %cst_9 = arith.constant dense<0.000000e+00> : vector<2x64xf32>
    %9 = tpu.matmul %8, %1, %cst_9 {dimension_numbers = #tpu.dot_dimension_numbers<[1], [0], [0], [1], [0, 0, 1, 1], [], []>} : vector<2x32xf32>, vector<32x64xf32>, vector<2x64xf32> -> vector<2x64xf32>
    %10 = arith.addf %7, %9 : vector<2x64xf32>
    %c0_10 = arith.constant 0 : index
    %c0_11 = arith.constant 0 : index
    %11 = vector.load %arg6[%c0_10, %c0_11] : memref<2x1xf32, #tpu.memory_space<vmem>>, vector<2x1xf32>
    %12 = vector.broadcast %11 : vector<2x1xf32> to vector<2x64xf32>
    %13 = arith.addf %10, %12 : vector<2x64xf32>
    %cst_12 = arith.constant 0.000000e+00 : f32
    %14 = vector.broadcast %cst_12 : f32 to vector<2x64xf32>
    %15 = arith.maximumf %13, %14 : vector<2x64xf32>
    %c0_13 = arith.constant 0 : index
    %c0_14 = arith.constant 0 : index
    %16 = vector.load %arg7[%c0_13, %c0_14] : memref<32x2xf32, #tpu.memory_space<vmem>>, vector<32x2xf32>
    %17 = vector.extract_strided_slice %16 {offsets = [0, 0], sizes = [32, 1], strides = [1, 1]} : vector<32x2xf32> to vector<32x1xf32>
    %18 = vector.extract_strided_slice %15 {offsets = [0, 0], sizes = [1, 64], strides = [1, 1]} : vector<2x64xf32> to vector<1x64xf32>
    %19 = vector.broadcast %17 : vector<32x1xf32> to vector<32x64xf32>
    %20 = vector.broadcast %18 : vector<1x64xf32> to vector<32x64xf32>
    %21 = arith.mulf %19, %20 : vector<32x64xf32>
    %22 = vector.extract_strided_slice %16 {offsets = [0, 1], sizes = [32, 1], strides = [1, 1]} : vector<32x2xf32> to vector<32x1xf32>
    %23 = vector.extract_strided_slice %15 {offsets = [1, 0], sizes = [1, 64], strides = [1, 1]} : vector<2x64xf32> to vector<1x64xf32>
    %24 = vector.broadcast %22 : vector<32x1xf32> to vector<32x64xf32>
    %25 = vector.broadcast %23 : vector<1x64xf32> to vector<32x64xf32>
    %26 = arith.mulf %24, %25 : vector<32x64xf32>
    %27 = arith.addf %21, %26 : vector<32x64xf32>
    %c0_15 = arith.constant 0 : index
    %c0_16 = arith.constant 0 : index
    %28 = vector.load %arg8[%c0_15, %c0_16] : memref<32x1xf32, #tpu.memory_space<vmem>>, vector<32x1xf32>
    %29 = vector.broadcast %28 : vector<32x1xf32> to vector<32x64xf32>
    %30 = arith.addf %27, %29 : vector<32x64xf32>
    %cst_17 = arith.constant 5.000000e-01 : f32
    %31 = vector.broadcast %cst_17 : f32 to vector<32x64xf32>
    %32 = arith.mulf %31, %30 : vector<32x64xf32>
    %33 = math.tanh %32 : vector<32x64xf32>
    %cst_18 = arith.constant 1.000000e+00 : f32
    %34 = vector.broadcast %cst_18 : f32 to vector<32x64xf32>
    %35 = arith.addf %33, %34 : vector<32x64xf32>
    %cst_19 = arith.constant 5.000000e-01 : f32
    %36 = vector.broadcast %cst_19 : f32 to vector<32x64xf32>
    %37 = arith.mulf %36, %35 : vector<32x64xf32>
    %c0_20 = arith.constant 0 : index
    %c0_21 = arith.constant 0 : index
    %c0_22 = arith.constant 0 : index
    %38 = vector.load %arg10[%c0_20, %c0_21, %c0_22] : memref<1x32x64xf32, #tpu.memory_space<vmem>>, vector<1x32x64xf32>
    %39 = vector.shape_cast %38 : vector<1x32x64xf32> to vector<32x64xf32>
    %40 = vector.shape_cast %37 : vector<32x64xf32> to vector<1x32x64xf32>
    tpu.vector_store %arg10[%c0_20, %c0_21, %c0_22], %40 {strides = array<i32>} : memref<1x32x64xf32, #tpu.memory_space<vmem>>, vector<1x32x64xf32>,
    %c0_23 = arith.constant 0 : index
    %c0_24 = arith.constant 0 : index
    %c0_25 = arith.constant 0 : index
    %41 = vector.load %arg2[%c0_23, %c0_24, %c0_25] : memref<1x32x64xf32, #tpu.memory_space<vmem>>, vector<1x32x64xf32>
    %42 = vector.shape_cast %41 : vector<1x32x64xf32> to vector<32x64xf32>
    %c0_26 = arith.constant 0 : index
    %c0_27 = arith.constant 0 : index
    %c0_28 = arith.constant 0 : index
    %43 = vector.load %arg3[%c0_26, %c0_27, %c0_28] : memref<1x32x64xf32, #tpu.memory_space<vmem>>, vector<1x32x64xf32>
    %44 = vector.shape_cast %43 : vector<1x32x64xf32> to vector<32x64xf32>
    %45 = arith.subf %42, %44 : vector<32x64xf32>
    %46 = math.absf %45 : vector<32x64xf32>
    %47 = arith.mulf %46, %37 : vector<32x64xf32>
    %c0_29 = arith.constant 0 : index
    %c0_30 = arith.constant 0 : index
    %c0_31 = arith.constant 0 : index
    %48 = vector.load %arg9[%c0_29, %c0_30, %c0_31] : memref<1x32x64xf32, #tpu.memory_space<vmem>>, vector<1x32x64xf32>
    %49 = vector.shape_cast %48 : vector<1x32x64xf32> to vector<32x64xf32>
    %50 = vector.shape_cast %47 : vector<32x64xf32> to vector<1x32x64xf32>
    tpu.vector_store %arg9[%c0_29, %c0_30, %c0_31], %50 {strides = array<i32>} : memref<1x32x64xf32, #tpu.memory_space<vmem>>, vector<1x32x64xf32>,
    return
  }
  func.func @transform_0(%arg0: i32, %arg1: i32) -> (i32, i32, i32) {
    %c0_i32 = arith.constant 0 : i32
    %c0_i32_0 = arith.constant 0 : i32
    return %arg0, %c0_i32, %arg1 : i32, i32, i32
  }
  func.func @transform_1(%arg0: i32, %arg1: i32) -> (i32, i32, i32) {
    %c0_i32 = arith.constant 0 : i32
    %c0_i32_0 = arith.constant 0 : i32
    return %arg0, %c0_i32, %arg1 : i32, i32, i32
  }
  func.func @transform_2(%arg0: i32, %arg1: i32) -> (i32, i32) {
    %c0_i32 = arith.constant 0 : i32
    %c0_i32_0 = arith.constant 0 : i32
    %c0_i32_1 = arith.constant 0 : i32
    return %c0_i32, %c0_i32_0 : i32, i32
  }
  func.func @transform_3(%arg0: i32, %arg1: i32) -> (i32, i32) {
    %c0_i32 = arith.constant 0 : i32
    %c0_i32_0 = arith.constant 0 : i32
    %c0_i32_1 = arith.constant 0 : i32
    return %c0_i32, %c0_i32_0 : i32, i32
  }
  func.func @transform_4(%arg0: i32, %arg1: i32) -> (i32, i32) {
    %c0_i32 = arith.constant 0 : i32
    %c0_i32_0 = arith.constant 0 : i32
    %c0_i32_1 = arith.constant 0 : i32
    return %c0_i32, %c0_i32_0 : i32, i32
  }
  func.func @transform_5(%arg0: i32, %arg1: i32) -> (i32, i32) {
    %c0_i32 = arith.constant 0 : i32
    %c0_i32_0 = arith.constant 0 : i32
    %c0_i32_1 = arith.constant 0 : i32
    return %c0_i32, %c0_i32_0 : i32, i32
  }
  func.func @transform_6(%arg0: i32, %arg1: i32) -> (i32, i32) {
    %c0_i32 = arith.constant 0 : i32
    %c0_i32_0 = arith.constant 0 : i32
    %c0_i32_1 = arith.constant 0 : i32
    return %c0_i32, %c0_i32_0 : i32, i32
  }
  func.func @transform_7(%arg0: i32, %arg1: i32) -> (i32, i32, i32) {
    %c0_i32 = arith.constant 0 : i32
    %c0_i32_0 = arith.constant 0 : i32
    return %arg0, %c0_i32, %arg1 : i32, i32, i32
  }
  func.func @transform_8(%arg0: i32, %arg1: i32) -> (i32, i32, i32) {
    %c0_i32 = arith.constant 0 : i32
    %c0_i32_0 = arith.constant 0 : i32
    return %arg0, %c0_i32, %arg1 : i32, i32, i32
  }
}

</mosaic_0001>

<llo_original>
// kernel: tpu_custom_call.1
$region0: #{tpu_custom_call.1}
  #allocation0 [shape = 'u32[]', space=smem, size = 0x4, offset = 0x4, fixed_abs, tag = 'smem constant byte address 0x4 - core index']
  #allocation1 [shape = 'u32[144,128]{1,0:T(1,128)}', space=vmem, size = 0x12000, scoped, tag = 'internal scratch']
  %s0 = inlined_call_operand.vmem [shape: f32[2,32,64], index: 0, kind: input, shape index: {}]
  %s1 = inlined_call_operand.hbm [shape: f32[2,32,64], index: 1, kind: input, shape index: {}]
  %s2 = inlined_call_operand.vmem [shape: f32[2,32], index: 2, kind: input, shape index: {}]
  %s3 = inlined_call_operand.vmem [shape: f32[2,32], index: 3, kind: input, shape index: {}]
  %s4 = inlined_call_operand.vmem [shape: f32[2,1], index: 4, kind: input, shape index: {}]
  %s5 = inlined_call_operand.vmem [shape: f32[32,2], index: 5, kind: input, shape index: {}]
  %s6 = inlined_call_operand.vmem [shape: f32[32,1], index: 6, kind: input, shape index: {}]
  %s7 = inlined_call_operand.hbm [shape: f32[2,32,64], index: 7, kind: output, shape index: {0}]
  %s8 = inlined_call_operand.hbm [shape: f32[2,32,64], index: 8, kind: output, shape index: {1}]
  %9 = xla_tuple %s7, %s8
  %s10 = sld [smem:[#allocation0]]
  $region73: #{tpu_custom_call.1} parent=0
    _
  %s12 = ssub.s32 1, %s10
  %s13 = scalar_select 0, %s12, %s10
  $region1: #{tpu_custom_call.1} parent=0
    #allocation2 [shape = 'u8[32768]{0}', space=vmem, size = 0x8000, scoped, tag = 'input window, operand 1']
    #allocation3 [shape = 's32[2]{0}', space=sflag, size = 0x8, scoped, tag = 'scoped memory for tpu_custom_call.1']
    #allocation4 [shape = 's32[2]{0}', space=sflag, size = 0x8, scoped, tag = 'scoped memory for tpu_custom_call.1']
    #allocation5 [shape = 'u8[32768]{0}', space=vmem, size = 0x8000, scoped, tag = 'output window, operand 0']
    #allocation6 [shape = 'u8[32768]{0}', space=vmem, size = 0x8000, scoped, tag = 'output window, operand 1']
    #allocation7 [shape = 's32[2]{0}', space=sflag, size = 0x8, scoped, tag = 'scoped memory for tpu_custom_call.1']
    %14 = vsyncpa [#allocation3], 0
    %s15 = scalar_lea.sflag [#allocation3], 1
    %16 = vsyncpa %s15, 0
    %17 = vsyncpa [#allocation4], 0
    %s18 = scalar_lea.sflag [#allocation4], 1
    %19 = vsyncpa %s18, 0
    %20 = vsyncpa [#allocation7], 0
    %s21 = scalar_lea.sflag [#allocation7], 1
    %22 = vsyncpa %s21, 0
    loop: start=0, step=1, limit=4
    $region2: #{tpu_custom_call.1} parent=1 // loop_pre_header
      _
    $region3: #{tpu_custom_call.1} parent=1 // loop_header
      %s24 = sphi 0, %s28
      %p25 = scmp.ge.s32.totalorder %s24, 4
      %s31 = sphi 0, %s43
      %s32 = sphi 0, %s39
      %s33 = sphi 0, %s31
      %s34 = sphi 0, %s32
      %s35 = sphi 0, %s33
      %s36 = sphi 0, %s34
      %s48 = sphi 0, %s50
      %s51 = sphi 0, %s48
      %s52 = sphi 0, %s51
      %s68 = sphi 0, %s52
      %s76 = sphi 0, %s78
      %s79 = sphi 0, %s76
      %s80 = sphi 0, %s79
      %s96 = sphi 0, %s80
      %s100 = sphi 0, %s100
      %s102 = sphi 0, %s100
      %s103 = sphi 0, %s102
      %s117 = sphi 0, %s103
      %s121 = sphi 0, %s121
      %s123 = sphi 0, %s121
      %s124 = sphi 0, %s123
      %s138 = sphi 0, %s124
      %s142 = sphi 0, %s142
      %s144 = sphi 0, %s142
      %s145 = sphi 0, %s144
      %s159 = sphi 0, %s145
      %s163 = sphi 0, %s163
      %s165 = sphi 0, %s163
      %s166 = sphi 0, %s165
      %s180 = sphi 0, %s166
      %s184 = sphi 0, %s184
      %s186 = sphi 0, %s184
      %s187 = sphi 0, %s186
      %s201 = sphi 0, %s187
      %s209 = sphi 0, %s211
      %s212 = sphi 0, %s209
      %s213 = sphi 0, %s212
      %s229 = sphi 0, %s213
      %s237 = sphi 0, %s239
      %s240 = sphi 0, %s237
      %s241 = sphi 0, %s240
      %s257 = sphi 0, %s241
    $region4: #{tpu_custom_call.1} parent=1 // loop_header_branch
      %27 = sbr.rel (%p25) target = $region8
    $region5: #{tpu_custom_call.1} parent=1 // loop_body
      %s29 = ssub.s32 %s24, 1
      %s30 = ssub.s32 %s24, 2
      %s37 = sadd.s32 1, %s32
      %p38 = scmp.ge.s32.totalorder %s37, 1
      %s39 = scalar_select %p38, 0, %s37
      %s40 = sadd.s32 1, %s31
      %s41 = scalar_select %p38, %s40, %s31
      %p42 = scmp.ge.s32.totalorder %s41, 2
      %s43 = scalar_select %p42, 0, %s41
      %s44 = ssub.s32 %s31, %s43
      %s45 = ssub.s32 %s32, %s39
      %s46 = sor.u32 %s44, %s45
      %p47 = scmp.eq.s32.totalorder %s46, 0
      %s49 = sadd.s32 %s48, 1
      %s50 = scalar_select %p47, %s48, %s49
      %p53 = pneg %p47
      %p54 = scmp.eq.s32.totalorder %s24, 1
      %p55 = por %p53, %p54
      %p56 = scmp.ne.s32.totalorder %s48, %s51
      %p57 = scmp.eq.s32.totalorder %s24, 0
      %p58 = por %p56, %p57
      %p59 = scmp.ne.s32.totalorder %s48, %s51
      %p60 = scmp.eq.s32.totalorder %s29, 1
      %p61 = por %p59, %p60
      %p62 = scmp.ne.s32.totalorder %s51, %s52
      %p63 = scmp.eq.s32.totalorder %s29, 0
      %p64 = por %p62, %p63
      %p65 = scmp.ne.s32.totalorder %s51, %s52
      %p66 = scmp.eq.s32.totalorder %s30, 1
      %p67 = por %p65, %p66
      %p69 = scmp.ne.s32.totalorder %s52, %s68
      %p70 = scmp.eq.s32.totalorder %s30, 0
      %p71 = por %p69, %p70
      %s72 = ssub.s32 %s31, %s43
      %s73 = ssub.s32 %s32, %s39
      %s74 = sor.u32 %s72, %s73
      %p75 = scmp.eq.s32.totalorder %s74, 0
      %s77 = sadd.s32 %s76, 1
      %s78 = scalar_select %p75, %s76, %s77
      %p81 = pneg %p75
      %p82 = scmp.eq.s32.totalorder %s24, 1
      %p83 = por %p81, %p82
      %p84 = scmp.ne.s32.totalorder %s76, %s79
      %p85 = scmp.eq.s32.totalorder %s24, 0
      %p86 = por %p84, %p85
      %p87 = scmp.ne.s32.totalorder %s76, %s79
      %p88 = scmp.eq.s32.totalorder %s29, 1
      %p89 = por %p87, %p88
      %p90 = scmp.ne.s32.totalorder %s79, %s80
      %p91 = scmp.eq.s32.totalorder %s29, 0
      %p92 = por %p90, %p91
      %p93 = scmp.ne.s32.totalorder %s79, %s80
      %p94 = scmp.eq.s32.totalorder %s30, 1
      %p95 = por %p93, %p94
      %p97 = scmp.ne.s32.totalorder %s80, %s96
      %p98 = scmp.eq.s32.totalorder %s30, 0
      %p99 = por %p97, %p98
      %s101 = sadd.s32 %s100, 1
      %p104 = scmp.eq.s32.totalorder %s24, 1
      %p105 = scmp.ne.s32.totalorder %s100, %s102
      %p106 = scmp.eq.s32.totalorder %s24, 0
      %p107 = por %p105, %p106
      %p108 = scmp.ne.s32.totalorder %s100, %s102
      %p109 = scmp.eq.s32.totalorder %s29, 1
      %p110 = por %p108, %p109
      %p111 = scmp.ne.s32.totalorder %s102, %s103
      %p112 = scmp.eq.s32.totalorder %s29, 0
      %p113 = por %p111, %p112
      %p114 = scmp.ne.s32.totalorder %s102, %s103
      %p115 = scmp.eq.s32.totalorder %s30, 1
      %p116 = por %p114, %p115
      %p118 = scmp.ne.s32.totalorder %s103, %s117
      %p119 = scmp.eq.s32.totalorder %s30, 0
      %p120 = por %p118, %p119
      %s122 = sadd.s32 %s121, 1
      %p125 = scmp.eq.s32.totalorder %s24, 1
      %p126 = scmp.ne.s32.totalorder %s121, %s123
      %p127 = scmp.eq.s32.totalorder %s24, 0
      %p128 = por %p126, %p127
      %p129 = scmp.ne.s32.totalorder %s121, %s123
      %p130 = scmp.eq.s32.totalorder %s29, 1
      %p131 = por %p129, %p130
      %p132 = scmp.ne.s32.totalorder %s123, %s124
      %p133 = scmp.eq.s32.totalorder %s29, 0
      %p134 = por %p132, %p133
      %p135 = scmp.ne.s32.totalorder %s123, %s124
      %p136 = scmp.eq.s32.totalorder %s30, 1
      %p137 = por %p135, %p136
      %p139 = scmp.ne.s32.totalorder %s124, %s138
      %p140 = scmp.eq.s32.totalorder %s30, 0
      %p141 = por %p139, %p140
      %s143 = sadd.s32 %s142, 1
      %p146 = scmp.eq.s32.totalorder %s24, 1
      %p147 = scmp.ne.s32.totalorder %s142, %s144
      %p148 = scmp.eq.s32.totalorder %s24, 0
      %p149 = por %p147, %p148
      %p150 = scmp.ne.s32.totalorder %s142, %s144
      %p151 = scmp.eq.s32.totalorder %s29, 1
      %p152 = por %p150, %p151
      %p153 = scmp.ne.s32.totalorder %s144, %s145
      %p154 = scmp.eq.s32.totalorder %s29, 0
      %p155 = por %p153, %p154
      %p156 = scmp.ne.s32.totalorder %s144, %s145
      %p157 = scmp.eq.s32.totalorder %s30, 1
      %p158 = por %p156, %p157
      %p160 = scmp.ne.s32.totalorder %s145, %s159
      %p161 = scmp.eq.s32.totalorder %s30, 0
      %p162 = por %p160, %p161
      %s164 = sadd.s32 %s163, 1
      %p167 = scmp.eq.s32.totalorder %s24, 1
      %p168 = scmp.ne.s32.totalorder %s163, %s165
      %p169 = scmp.eq.s32.totalorder %s24, 0
      %p170 = por %p168, %p169
      %p171 = scmp.ne.s32.totalorder %s163, %s165
      %p172 = scmp.eq.s32.totalorder %s29, 1
      %p173 = por %p171, %p172
      %p174 = scmp.ne.s32.totalorder %s165, %s166
      %p175 = scmp.eq.s32.totalorder %s29, 0
      %p176 = por %p174, %p175
      %p177 = scmp.ne.s32.totalorder %s165, %s166
      %p178 = scmp.eq.s32.totalorder %s30, 1
      %p179 = por %p177, %p178
      %p181 = scmp.ne.s32.totalorder %s166, %s180
      %p182 = scmp.eq.s32.totalorder %s30, 0
      %p183 = por %p181, %p182
      %s185 = sadd.s32 %s184, 1
      %p188 = scmp.eq.s32.totalorder %s24, 1
      %p189 = scmp.ne.s32.totalorder %s184, %s186
      %p190 = scmp.eq.s32.totalorder %s24, 0
      %p191 = por %p189, %p190
      %p192 = scmp.ne.s32.totalorder %s184, %s186
      %p193 = scmp.eq.s32.totalorder %s29, 1
      %p194 = por %p192, %p193
      %p195 = scmp.ne.s32.totalorder %s186, %s187
      %p196 = scmp.eq.s32.totalorder %s29, 0
      %p197 = por %p195, %p196
      %p198 = scmp.ne.s32.totalorder %s186, %s187
      %p199 = scmp.eq.s32.totalorder %s30, 1
      %p200 = por %p198, %p199
      %p202 = scmp.ne.s32.totalorder %s187, %s201
      %p203 = scmp.eq.s32.totalorder %s30, 0
      %p204 = por %p202, %p203
      %s205 = ssub.s32 %s31, %s43
      %s206 = ssub.s32 %s32, %s39
      %s207 = sor.u32 %s205, %s206
      %p208 = scmp.eq.s32.totalorder %s207, 0
      %s210 = sadd.s32 %s209, 1
      %s211 = scalar_select %p208, %s209, %s210
      %p214 = pneg %p208
      %p215 = scmp.eq.s32.totalorder %s24, 1
      %p216 = por %p214, %p215
      %p217 = scmp.ne.s32.totalorder %s209, %s212
      %p218 = scmp.eq.s32.totalorder %s24, 0
      %p219 = por %p217, %p218
      %p220 = scmp.ne.s32.totalorder %s209, %s212
      %p221 = scmp.eq.s32.totalorder %s29, 1
      %p222 = por %p220, %p221
      %p223 = scmp.ne.s32.totalorder %s212, %s213
      %p224 = scmp.eq.s32.totalorder %s29, 0
      %p225 = por %p223, %p224
      %p226 = scmp.ne.s32.totalorder %s212, %s213
      %p227 = scmp.eq.s32.totalorder %s30, 1
      %p228 = por %p226, %p227
      %p230 = scmp.ne.s32.totalorder %s213, %s229
      %p231 = scmp.eq.s32.totalorder %s30, 0
      %p232 = por %p230, %p231
      %s233 = ssub.s32 %s31, %s43
      %s234 = ssub.s32 %s32, %s39
      %s235 = sor.u32 %s233, %s234
      %p236 = scmp.eq.s32.totalorder %s235, 0
      %s238 = sadd.s32 %s237, 1
      %s239 = scalar_select %p236, %s237, %s238
      %p242 = pneg %p236
      %p243 = scmp.eq.s32.totalorder %s24, 1
      %p244 = por %p242, %p243
      %p245 = scmp.ne.s32.totalorder %s237, %s240
      %p246 = scmp.eq.s32.totalorder %s24, 0
      %p247 = por %p245, %p246
      %p248 = scmp.ne.s32.totalorder %s237, %s240
      %p249 = scmp.eq.s32.totalorder %s29, 1
      %p250 = por %p248, %p249
      %p251 = scmp.ne.s32.totalorder %s240, %s241
      %p252 = scmp.eq.s32.totalorder %s29, 0
      %p253 = por %p251, %p252
      %p254 = scmp.ne.s32.totalorder %s240, %s241
      %p255 = scmp.eq.s32.totalorder %s30, 1
      %p256 = por %p254, %p255
      %p258 = scmp.ne.s32.totalorder %s241, %s257
      %p259 = scmp.eq.s32.totalorder %s30, 0
      %p260 = por %p258, %p259
      %p261 = scmp.le.s32.totalorder 1, %s24
      %p262 = scmp.lt.s32.totalorder %s24, 3
      %p263 = pnand %p261, %p262
      %p264 = pneg %p263
      // Predicated region
      $region9: #{tpu_custom_call.1} parent=5 // pred_check
        _
      $region10: #{tpu_custom_call.1} parent=5 // pred_check_branch
        %266 = sbr.rel (%p263) target = $region12
      $region11: #{tpu_custom_call.1} parent=5 // pred_region
        %s267 = ssub.s32 %s24, 1
        // Predicated region
        $region13: #{tpu_custom_call.1} parent=11 // pred_check
          %p268 = pneg %p113
        $region14: #{tpu_custom_call.1} parent=11 // pred_check_branch
          %270 = sbr.rel (%p268) target = $region16
        $region15: #{tpu_custom_call.1} parent=11 // pred_region
          _
        $region16: #{tpu_custom_call.1} parent=11 // pred_fallthru
          _
        // Predicated region
        $region17: #{tpu_custom_call.1} parent=11 // pred_check
          %p271 = pneg %p134
        $region18: #{tpu_custom_call.1} parent=11 // pred_check_branch
          %273 = sbr.rel (%p271) target = $region20
        $region19: #{tpu_custom_call.1} parent=11 // pred_region
          _
        $region20: #{tpu_custom_call.1} parent=11 // pred_fallthru
          _
        // Predicated region
        $region21: #{tpu_custom_call.1} parent=11 // pred_check
          %p274 = pneg %p155
        $region22: #{tpu_custom_call.1} parent=11 // pred_check_branch
          %276 = sbr.rel (%p274) target = $region24
        $region23: #{tpu_custom_call.1} parent=11 // pred_region
          _
        $region24: #{tpu_custom_call.1} parent=11 // pred_fallthru
          _
        // Predicated region
        $region25: #{tpu_custom_call.1} parent=11 // pred_check
          %p277 = pneg %p176
        $region26: #{tpu_custom_call.1} parent=11 // pred_check_branch
          %279 = sbr.rel (%p277) target = $region28
        $region27: #{tpu_custom_call.1} parent=11 // pred_region
          _
        $region28: #{tpu_custom_call.1} parent=11 // pred_fallthru
          _
        // Predicated region
        $region29: #{tpu_custom_call.1} parent=11 // pred_check
          %p280 = pneg %p197
        $region30: #{tpu_custom_call.1} parent=11 // pred_check_branch
          %282 = sbr.rel (%p280) target = $region32
        $region31: #{tpu_custom_call.1} parent=11 // pred_region
          _
        $region32: #{tpu_custom_call.1} parent=11 // pred_fallthru
          _
      $region12: #{tpu_custom_call.1} parent=5 // pred_fallthru
        _
      %p283 = scmp.lt.s32.totalorder %s24, 2
      // Predicated region
      $region33: #{tpu_custom_call.1} parent=5 // pred_check
        %p284 = pneg %p283
      $region34: #{tpu_custom_call.1} parent=5 // pred_check_branch
        %286 = sbr.rel (%p284) target = $region36
      $region35: #{tpu_custom_call.1} parent=5 // pred_region
        // Predicated region
        $region37: #{tpu_custom_call.1} parent=35 // pred_check
          %p287 = pneg %p58
        $region38: #{tpu_custom_call.1} parent=35 // pred_check_branch
          %289 = sbr.rel (%p287) target = $region40
        $region39: #{tpu_custom_call.1} parent=35 // pred_region
          %p290 = scmp.lt.s32.totalorder %s31, 1
          %s291 = scalar_select %p290, %s31, 1
          %p292 = scmp.lt.s32.totalorder %s32, 0
          %s293 = scalar_select %p292, %s32, 0
          %s294 = smul.addr %s291, 4
          %s295 = sadd.s32 %s293, %s294
          %s296 = smul.addr %s295, 8
          %s297 = scalar_lea.vmem %s0, %s296
        $region40: #{tpu_custom_call.1} parent=35 // pred_fallthru
          _
        // Predicated region
        $region41: #{tpu_custom_call.1} parent=35 // pred_check
          %p298 = pneg %p86
        $region42: #{tpu_custom_call.1} parent=35 // pred_check_branch
          %300 = sbr.rel (%p298) target = $region44
        $region43: #{tpu_custom_call.1} parent=35 // pred_region
          %s301 = sand.u32 %s76, 1
          %s302 = scalar_lea.sflag [#allocation3], %s301
          %s303 = sand.u32 %s76, 1
          %s304 = smul.addr %s303, 32
          %s305 = scalar_lea.vmem [#allocation2], %s304
          %s307 = ssub.s32 512, 512
          %308 = vsyncadd %s302, %s307
          %s309 = smul.addr %s31, 4
          %s310 = sadd.s32 %s32, %s309
          %s311 = smul.addr %s310, 128
          %s312 = scalar_lea.hbm %s1, %s311
          %s313 = sshll.u32 %s305, 4
          %s314 = int_to_ptr.vmem [resolvable:$true] %s313
          %319 = dma.hbm_to_vmem [thread:$0]  %s312, 512, %s314, %s302, 128, 128, 8
        $region44: #{tpu_custom_call.1} parent=35 // pred_fallthru
          _
      $region36: #{tpu_custom_call.1} parent=5 // pred_fallthru
        _
      %p320 = scmp.le.s32.totalorder 1, %s24
      %p321 = scmp.lt.s32.totalorder %s24, 3
      %p322 = pnand %p320, %p321
      %p323 = pneg %p322
      // Predicated region
      $region45: #{tpu_custom_call.1} parent=5 // pred_check
        _
      $region46: #{tpu_custom_call.1} parent=5 // pred_check_branch
        %325 = sbr.rel (%p322) target = $region48
      $region47: #{tpu_custom_call.1} parent=5 // pred_region
        %s326 = ssub.s32 %s24, 1
        %s327 = sand.u32 %s79, 1
        %s328 = scalar_lea.sflag [#allocation3], %s327
        %s329 = sand.u32 %s79, 1
        %s330 = smul.addr %s329, 32
        %s331 = scalar_lea.vmem [#allocation2], %s330
        // Predicated region
        $region49: #{tpu_custom_call.1} parent=47 // pred_check
          %p332 = pneg %p92
        $region50: #{tpu_custom_call.1} parent=47 // pred_check_branch
          %334 = sbr.rel (%p332) target = $region52
        $region51: #{tpu_custom_call.1} parent=47 // pred_region
          %335 = dma.done %s328, 512
        $region52: #{tpu_custom_call.1} parent=47 // pred_fallthru
          _
        %p336 = scmp.lt.s32.totalorder %s33, 1
        %s337 = scalar_select %p336, %s33, 1
        %p338 = scmp.lt.s32.totalorder %s34, 0
        %s339 = scalar_select %p338, %s34, 0
        %s340 = smul.addr %s337, 4
        %s341 = sadd.s32 %s339, %s340
        %s342 = smul.addr %s341, 8
        %s343 = scalar_lea.vmem %s0, %s342
        %p344 = pneg %p64
        %p345 = pneg %p61
        %s346 = sand.u32 %s79, 1
        %s347 = scalar_lea.sflag [#allocation3], %s346
        %s348 = sand.u32 %s79, 1
        %s349 = smul.addr %s348, 32
        %s350 = scalar_lea.vmem [#allocation2], %s349
        %p351 = pneg %p92
        %p352 = pneg %p89
        %p353 = pneg %p113
        %p354 = pneg %p110
        %p355 = pneg %p134
        %p356 = pneg %p131
        %p357 = pneg %p155
        %p358 = pneg %p152
        %p359 = pneg %p176
        %p360 = pneg %p173
        %p361 = pneg %p197
        %p362 = pneg %p194
        %p363 = pneg %p225
        %p364 = pneg %p222
        %s365 = sand.u32 %s212, 1
        %s366 = scalar_lea.sflag [#allocation4], %s365
        %s367 = sand.u32 %s212, 1
        %s368 = smul.addr %s367, 32
        %s369 = scalar_lea.vmem [#allocation5], %s368
        %p370 = pneg %p253
        %p371 = pneg %p250
        %s372 = sand.u32 %s240, 1
        %s373 = scalar_lea.sflag [#allocation7], %s372
        %s374 = sand.u32 %s240, 1
        %s375 = smul.addr %s374, 32
        %s376 = scalar_lea.vmem [#allocation6], %s375
        %p377 = scmp.lt.s32.totalorder %s33, 1
        %s378 = scalar_select %p377, %s33, 1
        %p379 = scmp.lt.s32.totalorder %s34, 0
        %s380 = scalar_select %p379, %s34, 0
        %s381 = smul.addr %s378, 4
        %s382 = sadd.s32 %s380, %s381
        %s383 = smul.addr %s382, 8
        %s384 = scalar_lea.vmem %s0, %s383
        %v385 = vld [vmem:[%s384] sm:$0xff]
        %v386 = vld [vmem:[%s384 + $0x8] sm:$0xff]
        %v387 = vld [vmem:[%s384 + $0x10] sm:$0xff]
        %v388 = vld [vmem:[%s384 + $0x18] sm:$0xff]
        %v389 = vld [vmem:[%s331] sm:$0xff]
        %v390 = vld [vmem:[%s331 + $0x8] sm:$0xff]
        %v391 = vld [vmem:[%s331 + $0x10] sm:$0xff]
        %v392 = vld [vmem:[%s331 + $0x18] sm:$0xff]
        %v393 = vsub.f32 %v385, %v389
        %v394 = vsub.f32 %v386, %v390
        %v395 = vsub.f32 %v387, %v391
        %v396 = vsub.f32 %v388, %v392
        %v397 = vand.u32 2147483647, %v393
        %v398 = vand.u32 2147483647, %v394
        %v399 = vand.u32 2147483647, %v395
        %v400 = vand.u32 2147483647, %v396
        %v401 = vld [vmem:[%s2] sm:$0x3]
        %v402 = vld [vmem:[%s3] sm:$0x3]
        %vm403 = vcmask 261120
        %v405 = vsel %vm403, %v402, 0
        %407 = vmatprep.subr.mxu0 0.0
        %408 = vmatpush1.msra.mxu0 %v385
        %409 = vmatprep.subr.mxu0 0.0
        %410 = vmatpush1.msra.mxu0 %v386
        %411 = vmatprep.subr.mxu0 0.0
        %412 = vmatpush1.msra.mxu0 %v387
        %413 = vmatprep.subr.mxu0 0.0
        %414 = vmatpush1.msra.mxu0 %v388
        %415 = vmatprep.subr.mxu0 0.0
        %416 = vmatpush1.msra.mxu0 0.0
        %417 = vmatprep.subr.mxu0 0.0
        %418 = vmatpush1.msra.mxu0 0.0
        %419 = vmatprep.subr.mxu0 0.0
        %420 = vmatpush1.msra.mxu0 0.0
        %421 = vmatprep.subr.mxu0 0.0
        %422 = vmatpush1.msra.mxu0 0.0
        %423 = vmatprep.subr.mxu0 0.0
        %424 = vmatpush1.msra.mxu0 0.0
        %425 = vmatprep.subr.mxu0 0.0
        %426 = vmatpush1.msra.mxu0 0.0
        %427 = vmatprep.subr.mxu0 0.0
        %428 = vmatpush1.msra.mxu0 0.0
        %429 = vmatprep.subr.mxu0 0.0
        %430 = vmatpush1.msra.mxu0 0.0
        %431 = vmatprep.subr.mxu0 0.0
        %432 = vmatpush1.msra.mxu0 0.0
        %433 = vmatprep.subr.mxu0 0.0
        %434 = vmatpush1.msra.mxu0 0.0
        %435 = vmatprep.subr.mxu0 0.0
        %436 = vmatpush1.msra.mxu0 0.0
        %437 = vmatprep.subr.mxu0 0.0
        %438 = vmatpush1.msra.mxu0 0.0
        %439 = vmatprep.subr.mxu0 0.0
        %440 = vmatpush1.msra.mxu0 0.0
        %441 = vmatprep.subr.mxu0 0.0
        %442 = vmatpush1.msra.mxu0 0.0
        %443 = vmatprep.subr.mxu0 0.0
        %444 = vmatpush1.msra.mxu0 0.0
        %445 = vmatprep.subr.mxu0 0.0
        %446 = vmatpush1.msra.mxu0 0.0
        %447 = vmatprep.subr.mxu0 0.0
        %448 = vmatpush1.msra.mxu0 0.0
        %449 = vmatprep.subr.mxu0 0.0
        %450 = vmatpush1.msra.mxu0 0.0
        %451 = vmatprep.subr.mxu0 0.0
        %452 = vmatpush1.msra.mxu0 0.0
        %453 = vmatprep.subr.mxu0 0.0
        %454 = vmatpush1.msra.mxu0 0.0
        %455 = vmatprep.subr.mxu0 0.0
        %456 = vmatpush1.msra.mxu0 0.0
        %457 = vmatprep.subr.mxu0 0.0
        %458 = vmatpush1.msra.mxu0 0.0
        %459 = vmatprep.subr.mxu0 0.0
        %460 = vmatpush1.msra.mxu0 0.0
        %461 = vmatprep.subr.mxu0 0.0
        %462 = vmatpush1.msra.mxu0 0.0
        %463 = vmatprep.subr.mxu0 0.0
        %464 = vmatpush1.msra.mxu0 0.0
        %465 = vmatprep.subr.mxu0 0.0
        %466 = vmatpush1.msra.mxu0 0.0
        %467 = vmatprep.subr.mxu0 0.0
        %468 = vmatpush1.msra.mxu0 0.0
        %469 = vmatprep.subr.mxu0 0.0
        %470 = vmatpush1.msra.mxu0 0.0
        %471 = vmatprep.mubr.f32.mxu0 0.0
        %472 = vmatmul.mubr.f32.gmra.mrb[0].mxu0 %v405
        %v473 = vpop.f32.mrb[0].mxu0
        %v474 = vadd.f32 0.0, %v473
        %v475 = vpop.f32.mrb[0].mxu0
        %476 = vdwg.mxu0
        %v478 = vsel %vm403, %v401, 0
        %480 = vmatprep.subr.mxu0 0.0
        %481 = vmatpush1.msra.mxu0 %v397
        %482 = vmatprep.subr.mxu0 0.0
        %483 = vmatpush1.msra.mxu0 %v398
        %484 = vmatprep.subr.mxu0 0.0
        %485 = vmatpush1.msra.mxu0 %v399
        %486 = vmatprep.subr.mxu0 0.0
        %487 = vmatpush1.msra.mxu0 %v400
        %488 = vmatprep.subr.mxu0 0.0
        %489 = vmatpush1.msra.mxu0 0.0
        %490 = vmatprep.subr.mxu0 0.0
        %491 = vmatpush1.msra.mxu0 0.0
        %492 = vmatprep.subr.mxu0 0.0
        %493 = vmatpush1.msra.mxu0 0.0
        %494 = vmatprep.subr.mxu0 0.0
        %495 = vmatpush1.msra.mxu0 0.0
        %496 = vmatprep.subr.mxu0 0.0
        %497 = vmatpush1.msra.mxu0 0.0
        %498 = vmatprep.subr.mxu0 0.0
        %499 = vmatpush1.msra.mxu0 0.0
        %500 = vmatprep.subr.mxu0 0.0
        %501 = vmatpush1.msra.mxu0 0.0
        %502 = vmatprep.subr.mxu0 0.0
        %503 = vmatpush1.msra.mxu0 0.0
        %504 = vmatprep.subr.mxu0 0.0
        %505 = vmatpush1.msra.mxu0 0.0
        %506 = vmatprep.subr.mxu0 0.0
        %507 = vmatpush1.msra.mxu0 0.0
        %508 = vmatprep.subr.mxu0 0.0
        %509 = vmatpush1.msra.mxu0 0.0
        %510 = vmatprep.subr.mxu0 0.0
        %511 = vmatpush1.msra.mxu0 0.0
        %512 = vmatprep.subr.mxu0 0.0
        %513 = vmatpush1.msra.mxu0 0.0
        %514 = vmatprep.subr.mxu0 0.0
        %515 = vmatpush1.msra.mxu0 0.0
        %516 = vmatprep.subr.mxu0 0.0
        %517 = vmatpush1.msra.mxu0 0.0
        %518 = vmatprep.subr.mxu0 0.0
        %519 = vmatpush1.msra.mxu0 0.0
        %520 = vmatprep.subr.mxu0 0.0
        %521 = vmatpush1.msra.mxu0 0.0
        %522 = vmatprep.subr.mxu0 0.0
        %523 = vmatpush1.msra.mxu0 0.0
        %524 = vmatprep.subr.mxu0 0.0
        %525 = vmatpush1.msra.mxu0 0.0
        %526 = vmatprep.subr.mxu0 0.0
        %527 = vmatpush1.msra.mxu0 0.0
        %528 = vmatprep.subr.mxu0 0.0
        %529 = vmatpush1.msra.mxu0 0.0
        %530 = vmatprep.subr.mxu0 0.0
        %531 = vmatpush1.msra.mxu0 0.0
        %532 = vmatprep.subr.mxu0 0.0
        %533 = vmatpush1.msra.mxu0 0.0
        %534 = vmatprep.subr.mxu0 0.0
        %535 = vmatpush1.msra.mxu0 0.0
        %536 = vmatprep.subr.mxu0 0.0
        %537 = vmatpush1.msra.mxu0 0.0
        %538 = vmatprep.subr.mxu0 0.0
        %539 = vmatpush1.msra.mxu0 0.0
        %540 = vmatprep.subr.mxu0 0.0
        %541 = vmatpush1.msra.mxu0 0.0
        %542 = vmatprep.subr.mxu0 0.0
        %543 = vmatpush1.msra.mxu0 0.0
        %544 = vmatprep.mubr.f32.mxu0 0.0
        %545 = vmatmul.mubr.f32.gmra.mrb[0].mxu0 %v478
        %v546 = vpop.f32.mrb[0].mxu0
        %v547 = vadd.f32 %v474, %v546
        %v548 = vpop.f32.mrb[0].mxu0
        %549 = vdwg.mxu0
        %v550 = vld [vmem:[%s4] sm:$0x3]
        %552 = vset.pattern.permute.xlu0 0
        %553 = vperm.xlu0 %552, %v550
        %v554 = vpop.permute.xlu0 %553
        %v556 = vadd.f32 %v547, %v554
        %v557 = vmax.f32 %v556, 0.0
        %v558 = vld [vmem:[%s5] sm:$0xff]
        %v559 = vld [vmem:[%s5 + $0x8] sm:$0xff]
        %v560 = vld [vmem:[%s5 + $0x10] sm:$0xff]
        %v561 = vld [vmem:[%s5 + $0x18] sm:$0xff]
        %563 = vset.pattern.permute.xlu0 0
        %564 = vperm.xlu0 %563, %v558
        %v565 = vpop.permute.xlu0 %564
        %568 = vset.pattern.permute.xlu0 0
        %569 = vperm.xlu0 %568, %v559
        %v570 = vpop.permute.xlu0 %569
        %573 = vset.pattern.permute.xlu0 0
        %574 = vperm.xlu0 %573, %v560
        %v575 = vpop.permute.xlu0 %574
        %578 = vset.pattern.permute.xlu0 0
        %579 = vperm.xlu0 %578, %v561
        %v580 = vpop.permute.xlu0 %579
        %v582 = vlaneseq
        %v583 = vshrl.u32 %v582, 7
        %v584 = vsub.s32 0, %v583
        %v585 = vrot.slane %v557, %v584
        %v586 = vmul.f32 %v565, %v585
        %v587 = vmul.f32 %v570, %v585
        %v588 = vmul.f32 %v575, %v585
        %v589 = vmul.f32 %v580, %v585
        %590 = vset.pattern.permute.xlu0 1
        %591 = vperm.xlu0 %590, %v558
        %v592 = vpop.permute.xlu0 %591
        %594 = vset.pattern.permute.xlu0 1
        %595 = vperm.xlu0 %594, %v559
        %v596 = vpop.permute.xlu0 %595
        %598 = vset.pattern.permute.xlu0 1
        %599 = vperm.xlu0 %598, %v560
        %v600 = vpop.permute.xlu0 %599
        %602 = vset.pattern.permute.xlu0 1
        %603 = vperm.xlu0 %602, %v561
        %v604 = vpop.permute.xlu0 %603
        %v606 = vlaneseq
        %v607 = vshrl.u32 %v606, 7
        %v608 = vsub.s32 1, %v607
        %v609 = vrot.slane %v557, %v608
        %v610 = vmul.f32 %v592, %v609
        %v611 = vmul.f32 %v596, %v609
        %v612 = vmul.f32 %v600, %v609
        %v613 = vmul.f32 %v604, %v609
        %v614 = vadd.f32 %v586, %v610
        %v615 = vadd.f32 %v587, %v611
        %v616 = vadd.f32 %v588, %v612
        %v617 = vadd.f32 %v589, %v613
        %v618 = vld [vmem:[%s6] sm:$0xff]
        %v619 = vld [vmem:[%s6 + $0x8] sm:$0xff]
        %v620 = vld [vmem:[%s6 + $0x10] sm:$0xff]
        %v621 = vld [vmem:[%s6 + $0x18] sm:$0xff]
        %623 = vset.pattern.permute.xlu0 0
        %624 = vperm.xlu0 %623, %v618
        %v625 = vpop.permute.xlu0 %624
        %628 = vset.pattern.permute.xlu0 0
        %629 = vperm.xlu0 %628, %v619
        %v630 = vpop.permute.xlu0 %629
        %633 = vset.pattern.permute.xlu0 0
        %634 = vperm.xlu0 %633, %v620
        %v635 = vpop.permute.xlu0 %634
        %638 = vset.pattern.permute.xlu0 0
        %639 = vperm.xlu0 %638, %v621
        %v640 = vpop.permute.xlu0 %639
        %v642 = vadd.f32 %v614, %v625
        %v643 = vadd.f32 %v615, %v630
        %v644 = vadd.f32 %v616, %v635
        %v645 = vadd.f32 %v617, %v640
        %v646 = vmul.f32 %v642, 0.5
        %v647 = vmul.f32 %v643, 0.5
        %v648 = vmul.f32 %v644, 0.5
        %v649 = vmul.f32 %v645, 0.5
        %v650 = vtanh.pop %v646
        %v651 = vtanh.pop %v647
        %v652 = vtanh.pop %v648
        %v653 = vtanh.pop %v649
        %v654 = vadd.f32 %v650, 1.0
        %v655 = vadd.f32 %v651, 1.0
        %v656 = vadd.f32 %v652, 1.0
        %v657 = vadd.f32 %v653, 1.0
        %v658 = vmul.f32 %v654, 0.5
        %v659 = vmul.f32 %v655, 0.5
        %v660 = vmul.f32 %v656, 0.5
        %v661 = vmul.f32 %v657, 0.5
        %vm662 = vcmask 523264
        %663 = vst.msk [vmem:[%s376] sm:$0xff] %vm662, %v658
        %664 = vst.msk [vmem:[%s376 + $0x8] sm:$0xff] %vm662, %v659
        %665 = vst.msk [vmem:[%s376 + $0x10] sm:$0xff] %vm662, %v660
        %666 = vst.msk [vmem:[%s376 + $0x18] sm:$0xff] %vm662, %v661
        %v667 = vld [vmem:[%s384] sm:$0xff]
        %v668 = vld [vmem:[%s384 + $0x8] sm:$0xff]
        %v669 = vld [vmem:[%s384 + $0x10] sm:$0xff]
        %v670 = vld [vmem:[%s384 + $0x18] sm:$0xff]
        %v671 = vld [vmem:[%s331] sm:$0xff]
        %v672 = vld [vmem:[%s331 + $0x8] sm:$0xff]
        %v673 = vld [vmem:[%s331 + $0x10] sm:$0xff]
        %v674 = vld [vmem:[%s331 + $0x18] sm:$0xff]
        %v675 = vsub.f32 %v667, %v671
        %v676 = vsub.f32 %v668, %v672
        %v677 = vsub.f32 %v669, %v673
        %v678 = vsub.f32 %v670, %v674
        %v679 = vand.u32 2147483647, %v675
        %v680 = vand.u32 2147483647, %v676
        %v681 = vand.u32 2147483647, %v677
        %v682 = vand.u32 2147483647, %v678
        %v683 = vmul.f32 %v679, %v658
        %v684 = vmul.f32 %v680, %v659
        %v685 = vmul.f32 %v681, %v660
        %v686 = vmul.f32 %v682, %v661
        %687 = vst.msk [vmem:[%s369] sm:$0xff] %vm662, %v683
        %688 = vst.msk [vmem:[%s369 + $0x8] sm:$0xff] %vm662, %v684
        %689 = vst.msk [vmem:[%s369 + $0x10] sm:$0xff] %vm662, %v685
        %690 = vst.msk [vmem:[%s369 + $0x18] sm:$0xff] %vm662, %v686
        %s691 = sand.u32 %s212, 1
        %s692 = scalar_lea.sflag [#allocation4], %s691
        %s693 = sand.u32 %s212, 1
        %s694 = smul.addr %s693, 32
        %s695 = scalar_lea.vmem [#allocation5], %s694
        %s696 = sand.u32 %s240, 1
        %s697 = scalar_lea.sflag [#allocation7], %s696
        %s698 = sand.u32 %s240, 1
        %s699 = smul.addr %s698, 32
        %s700 = scalar_lea.vmem [#allocation6], %s699
        // Predicated region
        $region53: #{tpu_custom_call.1} parent=47 // pred_check
          %p701 = pneg %p222
        $region54: #{tpu_custom_call.1} parent=47 // pred_check_branch
          %703 = sbr.rel (%p701) target = $region56
        $region55: #{tpu_custom_call.1} parent=47 // pred_region
          %s705 = ssub.s32 512, 512
          %706 = vsyncadd %s692, %s705
          %s707 = smul.addr %s33, 4
          %s708 = sadd.s32 %s34, %s707
          %s709 = smul.addr %s708, 128
          %s710 = scalar_lea.hbm %s7, %s709
          %s711 = sshll.u32 %s695, 4
          %s712 = int_to_ptr.vmem [resolvable:$true] %s711
          %717 = dma.vmem_to_hbm [thread:$0]  %s712, 512, %s710, %s692, 128, 128, 8
        $region56: #{tpu_custom_call.1} parent=47 // pred_fallthru
          _
        // Predicated region
        $region57: #{tpu_custom_call.1} parent=47 // pred_check
          %p718 = pneg %p250
        $region58: #{tpu_custom_call.1} parent=47 // pred_check_branch
          %720 = sbr.rel (%p718) target = $region60
        $region59: #{tpu_custom_call.1} parent=47 // pred_region
          %s722 = ssub.s32 512, 512
          %723 = vsyncadd %s697, %s722
          %s724 = smul.addr %s33, 4
          %s725 = sadd.s32 %s34, %s724
          %s726 = smul.addr %s725, 128
          %s727 = scalar_lea.hbm %s8, %s726
          %s728 = sshll.u32 %s700, 4
          %s729 = int_to_ptr.vmem [resolvable:$true] %s728
          %734 = dma.vmem_to_hbm [thread:$0]  %s729, 512, %s727, %s697, 128, 128, 8
        $region60: #{tpu_custom_call.1} parent=47 // pred_fallthru
          _
      $region48: #{tpu_custom_call.1} parent=5 // pred_fallthru
        _
      %p735 = scmp.le.s32.totalorder 2, %s24
      // Predicated region
      $region61: #{tpu_custom_call.1} parent=5 // pred_check
        %p736 = pneg %p735
      $region62: #{tpu_custom_call.1} parent=5 // pred_check_branch
        %738 = sbr.rel (%p736) target = $region64
      $region63: #{tpu_custom_call.1} parent=5 // pred_region
        %s739 = ssub.s32 %s24, 2
        // Predicated region
        $region65: #{tpu_custom_call.1} parent=63 // pred_check
          %p740 = pneg %p228
        $region66: #{tpu_custom_call.1} parent=63 // pred_check_branch
          %742 = sbr.rel (%p740) target = $region68
        $region67: #{tpu_custom_call.1} parent=63 // pred_region
          %s743 = sand.u32 %s213, 1
          %s744 = scalar_lea.sflag [#allocation4], %s743
          %s745 = sand.u32 %s213, 1
          %s746 = smul.addr %s745, 32
          %s747 = scalar_lea.vmem [#allocation5], %s746
          %748 = dma.done %s744, 512
        $region68: #{tpu_custom_call.1} parent=63 // pred_fallthru
          _
        // Predicated region
        $region69: #{tpu_custom_call.1} parent=63 // pred_check
          %p749 = pneg %p256
        $region70: #{tpu_custom_call.1} parent=63 // pred_check_branch
          %751 = sbr.rel (%p749) target = $region72
        $region71: #{tpu_custom_call.1} parent=63 // pred_region
          %s752 = sand.u32 %s241, 1
          %s753 = scalar_lea.sflag [#allocation7], %s752
          %s754 = sand.u32 %s241, 1
          %s755 = smul.addr %s754, 32
          %s756 = scalar_lea.vmem [#allocation6], %s755
          %757 = dma.done %s753, 512
        $region72: #{tpu_custom_call.1} parent=63 // pred_fallthru
          _
      $region64: #{tpu_custom_call.1} parent=5 // pred_fallthru
        _
    $region6: #{tpu_custom_call.1} parent=1 // loop_footer
      %s28 = sadd.s32 1, %s24
    $region7: #{tpu_custom_call.1} parent=1 // loop_footer_branch
      %23 = sbr.rel target = $region3
    $region8: #{tpu_custom_call.1} parent=1 // loop_exit
      _
    %758 = vsyncpa [#allocation3], 1
    %s759 = scalar_lea.sflag [#allocation3], 1
    %760 = vsyncpa %s759, 1
    %761 = vsyncpa [#allocation4], 1
    %s762 = scalar_lea.sflag [#allocation4], 1
    %763 = vsyncpa %s762, 1
    %764 = vsyncpa [#allocation7], 1
    %s765 = scalar_lea.sflag [#allocation7], 1
    %766 = vsyncpa %s765, 1

</llo_original>
